<compile_context>
chip_gen: v5e
topology: v5e:2x2
jax: 0.10.0
libtpu: 0.0.40
codegen_flags: <defaults>
</compile_context>

<pallas_src>
import functools
import math

import jax
import jax.numpy as jnp
from jax import lax
from jax.experimental import pallas as pl
from jax.experimental.pallas import tpu as pltpu


# ---------------------------------------------------------------------------
# Generation-aware VMEM limit (v5e/v6e: 128 MiB phys -> 96 MiB; v7x: 64 -> 48).
# ---------------------------------------------------------------------------
@functools.lru_cache(maxsize=None)
def _vmem_limit_bytes():
    cap = 64 * 1024 * 1024          # conservative fallback (v7x physical VMEM)
    try:
        info = pltpu.get_tpu_info()
        cap = int(getattr(info, "vmem_capacity_bytes", cap))
    except Exception:
        pass
    return (cap * 3) // 4           # leave headroom for Pallas internals


def _pick_tile(dim, target, granule):
    """Largest multiple of `granule` <= target that divides dim, else full dim."""
    if dim <= target:
        return dim
    t = (target // granule) * granule
    while t >= granule:
        if dim % t == 0:
            return t
        t -= granule
    return dim  # fall back to a single full-extent block (always legal)


# ---------------------------------------------------------------------------
# Tiled matmul kernel (bf16 MXU inputs, fp32 accumulation, optional fused bias)
# ---------------------------------------------------------------------------
def _matmul_body(x_ref, w_ref, b_ref, o_ref, acc_ref):
    k = pl.program_id(2)

    @pl.when(k == 0)
    def _():
        acc_ref[...] = jnp.zeros_like(acc_ref[...])

    # bf16 MXU operands (activation cast happens on the VMEM tile), fp32 acc.
    acc_ref[...] += jnp.dot(
        x_ref[...].astype(jnp.bfloat16), w_ref[...],
        preferred_element_type=jnp.float32)

    @pl.when(k == pl.num_programs(2) - 1)
    def _():
        acc = acc_ref[...]
        if b_ref is not None:
            acc = acc + b_ref[...]          # fused fp32 bias epilogue
        o_ref[...] = acc.astype(o_ref.dtype)


def _matmul_kernel(x_ref, w_ref, o_ref, acc_ref):
    _matmul_body(x_ref, w_ref, None, o_ref, acc_ref)


def _matmul_bias_kernel(x_ref, w_ref, b_ref, o_ref, acc_ref):
    _matmul_body(x_ref, w_ref, b_ref, o_ref, acc_ref)


def pallas_matmul(x2d, w_bf16, bias=None, *, out_dtype=jnp.bfloat16):
    """x2d: (M, K) fp32/bf16, w_bf16: (K, N) bf16 [+ bias (1, N) fp32] -> (M, N)."""
    M, K = x2d.shape
    K2, N = w_bf16.shape
    assert K == K2, (K, K2)

    vmem_limit = _vmem_limit_bytes()
    budget = int(vmem_limit * 0.6)
    xb = jnp.dtype(x2d.dtype).itemsize
    ob = jnp.dtype(out_dtype).itemsize

    def _usage(tm, tn, tk):
        # double-buffered x / w / out tiles + fp32 accumulator (+ tiny bias).
        return (2 * tm * tk * xb + 2 * tk * tn * 2
                + 2 * tm * tn * ob + tm * tn * 4 + 2 * tn * 4)

    # Try large tiles first (per-step overhead ~0.35us dominates small tiles),
    # shrink until the double-buffered footprint fits the VMEM budget.
    for tm_t, tn_t, tk_t in ((1024, 4096, 2048), (512, 2048, 2048),
                             (512, 1024, 1024), (256, 1024, 512),
                             (256, 512, 512), (128, 512, 256),
                             (128, 256, 256)):
        tm = _pick_tile(M, tm_t, 8)
        tn = _pick_tile(N, tn_t, 128)    # keep output stores lane-dense
        tk = _pick_tile(K, tk_t, 128)
        if _usage(tm, tn, tk) <= budget:
            break
    grid = (M // tm, N // tn, K // tk)

    in_specs = [
        pl.BlockSpec((tm, tk), lambda i, j, k: (i, k)),
        pl.BlockSpec((tk, tn), lambda i, j, k: (k, j)),
    ]
    operands = [x2d, w_bf16]
    if bias is not None:
        in_specs.append(pl.BlockSpec((1, tn), lambda i, j, k: (0, j)))
        operands.append(bias)
        kernel = _matmul_bias_kernel
    else:
        kernel = _matmul_kernel

    cost = pl.CostEstimate(
        flops=2 * M * N * K,
        transcendentals=0,
        bytes_accessed=xb * M * K + 2 * K * N + ob * M * N,
    )

    return pl.pallas_call(
        kernel,
        out_shape=jax.ShapeDtypeStruct((M, N), out_dtype),
        grid_spec=pltpu.PrefetchScalarGridSpec(
            num_scalar_prefetch=0,
            grid=grid,
            in_specs=in_specs,
            out_specs=pl.BlockSpec((tm, tn), lambda i, j, k: (i, j)),
            scratch_shapes=[pltpu.VMEM((tm, tn), jnp.float32)],
        ),
        compiler_params=pltpu.CompilerParams(
            dimension_semantics=("parallel", "parallel", "arbitrary"),
            vmem_limit_bytes=vmem_limit,
        ),
        cost_estimate=cost,
    )(*operands)


# ---------------------------------------------------------------------------
# Flash-style attention kernel (online softmax, fp32 stats, bf16 matmuls).
# Heads are packed G-per-step and addressed directly out of the projection
# output columns ('b n (h d)' layout) via the BlockSpec index maps.
# ---------------------------------------------------------------------------
def _flash_attn_kernel(q_ref, k_ref, v_ref, o_ref, m_sc, l_sc, acc_sc, *,
                       heads_per_step, dim_head):
    ki = pl.program_id(3)

    @pl.when(ki == 0)
    def _():
        m_sc[...] = jnp.full_like(m_sc[...], -jnp.inf)
        l_sc[...] = jnp.zeros_like(l_sc[...])
        acc_sc[...] = jnp.zeros_like(acc_sc[...])

    q = q_ref[0]        # (tq, G*D) bf16; softmax scale pre-folded into Wq
    k = k_ref[0]        # (tk, G*D) bf16
    v = v_ref[0]        # (tk, G*D) bf16
    D = dim_head

    for g in range(heads_per_step):      # static unroll over packed heads
        qg = q[:, g * D:(g + 1) * D]
        kg = k[:, g * D:(g + 1) * D]
        vg = v[:, g * D:(g + 1) * D]
        # sim = q @ k^T contracting D directly (no k.T), fp32 MXU accumulation
        # ("fp32 sim" per _ATTN_PRECISION intent).
        s = lax.dot_general(qg, kg, (((1,), (1,)), ((), ())),
                            preferred_element_type=jnp.float32)   # (tq, tk)
        m_prev = m_sc[g]                                          # (tq, 1)
        m_new = jnp.maximum(m_prev, jnp.max(s, axis=-1, keepdims=True))
        alpha = jnp.exp(m_prev - m_new)
        p = jnp.exp(s - m_new)                                    # fp32 softmax
        l_sc[g] = alpha * l_sc[g] + jnp.sum(p, axis=-1, keepdims=True)
        acc_sc[g] = alpha * acc_sc[g] + jnp.dot(
            p.astype(jnp.bfloat16), vg, preferred_element_type=jnp.float32)
        m_sc[g] = m_new

    @pl.when(ki == pl.num_programs(3) - 1)
    def _():
        outs = [acc_sc[g] * pl.reciprocal(l_sc[g], approx=True)   # EUP slot
                for g in range(heads_per_step)]
        # One lane-dense (tq, G*D >= 128) store in 'b n (h d)' layout.
        o_ref[0] = jnp.concatenate(outs, axis=-1).astype(o_ref.dtype)


def _heads_per_step(heads, dim_head):
    """Smallest head group whose column width G*dim_head is 128-lane aligned."""
    for g in range(1, heads + 1):
        if heads % g == 0 and (g * dim_head) % 128 == 0:
            return g
    # TODO(synk): transpose-based fallback for non-128-aligned head widths.
    raise NotImplementedError(
        f"no lane-aligned head grouping for heads={heads}, dim_head={dim_head}")


def pallas_flash_attention(q_src, kv_src, *, heads, dim_head, heads_per_step,
                           q_col0, k_col0, v_col0, seq_q, seq_kv,
                           tq=256, tk=512):
    """Flash attention reading q/k/v straight out of projection outputs.

    q_src : (B, seq_q, Wq)  -- q lives at column block q_col0 (units of G*D).
    kv_src: (B, seq_kv, Wkv) -- k at column block k_col0, v at v_col0.
    Returns (B, seq_q, heads*dim_head) bf16 in 'b n (h d)' layout (no transposes).
    """
    B = q_src.shape[0]
    G = heads_per_step
    GD = G * dim_head
    HG = heads // G
    inner = heads * dim_head

    tq = _pick_tile(seq_q, tq, 8)
    tk = _pick_tile(seq_kv, tk, 8)
    grid = (B, HG, seq_q // tq, seq_kv // tk)

    cost = pl.CostEstimate(
        flops=4 * B * heads * seq_q * seq_kv * dim_head,
        transcendentals=B * heads * seq_q * seq_kv,
        bytes_accessed=2 * B * (2 * seq_q * inner + 2 * seq_kv * inner),
    )

    kernel = functools.partial(_flash_attn_kernel,
                               heads_per_step=G, dim_head=dim_head)
    return pl.pallas_call(
        kernel,
        out_shape=jax.ShapeDtypeStruct((B, seq_q, inner), jnp.bfloat16),
        grid_spec=pltpu.PrefetchScalarGridSpec(
            num_scalar_prefetch=0,
            grid=grid,
            in_specs=[
                pl.BlockSpec((1, tq, GD),
                             lambda b, hg, qi, ki: (b, qi, q_col0 + hg)),
                pl.BlockSpec((1, tk, GD),
                             lambda b, hg, qi, ki: (b, ki, k_col0 + hg)),
                pl.BlockSpec((1, tk, GD),
                             lambda b, hg, qi, ki: (b, ki, v_col0 + hg)),
            ],
            out_specs=pl.BlockSpec((1, tq, GD),
                                   lambda b, hg, qi, ki: (b, qi, hg)),
            scratch_shapes=[
                pltpu.VMEM((G, tq, 1), jnp.float32),         # running max
                pltpu.VMEM((G, tq, 1), jnp.float32),         # running denom
                pltpu.VMEM((G, tq, dim_head), jnp.float32),  # fp32 PV accumulator
            ],
        ),
        compiler_params=pltpu.CompilerParams(
            # Leading batch / head-group / q axes parallel (megacore / v7x 2-TC).
            dimension_semantics=("parallel", "parallel", "parallel", "arbitrary"),
            vmem_limit_bytes=_vmem_limit_bytes(),
        ),
        cost_estimate=cost,
    )(q_src, kv_src, kv_src)


# ---------------------------------------------------------------------------
# Parameter setup (one-time prep) + forward glue
# ---------------------------------------------------------------------------
def init_cross_attention3_params(key, query_dim, context_dim=None, heads=8, dim_head=64):
    context_dim = query_dim if context_dim is None else context_dim
    inner_dim = heads * dim_head
    kq, kk, kv, ko, kb = jax.random.split(key, 5)
    s = 0.02
    # Weights stored as (in_features, out_features), i.e. transposed vs torch.
    return {
        "wq": s * jax.random.normal(kq, (query_dim, inner_dim), jnp.float32),
        "wk": s * jax.random.normal(kk, (context_dim, inner_dim), jnp.float32),
        "wv": s * jax.random.normal(kv, (context_dim, inner_dim), jnp.float32),
        "wo": s * jax.random.normal(ko, (inner_dim, query_dim), jnp.float32),
        "bo": s * jax.random.normal(kb, (query_dim,), jnp.float32),
    }


def prepare_cross_attention3_params(params, *, heads, dim_head):
    """One-time weight prep (NOT per forward): fold softmax scale into Wq,
    fuse projections, cast weights to bf16, reshape bias."""
    scale = dim_head ** (-0.5)
    wq = params["wq"] * scale                     # fold scale into Wq
    prepared = {
        "wq": wq.astype(jnp.bfloat16),
        "w_kv": jnp.concatenate([params["wk"], params["wv"]],
                                axis=1).astype(jnp.bfloat16),
        "wo": params["wo"].astype(jnp.bfloat16),
        "bo": params["bo"].reshape(1, -1).astype(jnp.float32),
    }
    if params["wq"].shape[0] == params["wk"].shape[0]:
        # Self-attention fused projection x @ [Wq | Wk | Wv].
        prepared["w_qkv"] = jnp.concatenate(
            [wq, params["wk"], params["wv"]], axis=1).astype(jnp.bfloat16)
    return prepared


def cross_attention3_forward(prepared, x, context=None, *, heads, dim_head):
    """Forward matching CrossAttention3.forward (dropout=0.0, mask=None)."""
    # TODO(synk): the optional `mask` branch (masked_fill + repeat over heads)
    #             of the PyTorch forward is not implemented.
    B, N, Cq = x.shape
    inner = heads * dim_head
    G = _heads_per_step(heads, dim_head)
    HG = heads // G

    if context is None:
        # Self-attention: one fused wide projection; activations read once.
        qkv = pallas_matmul(x.reshape(B * N, Cq), prepared["w_qkv"],
                            out_dtype=jnp.bfloat16)
        qkv3 = qkv.reshape(B, N, 3 * inner)       # free reshape (row-major)
        q_src, kv_src, M = qkv3, qkv3, N
        q_col0, k_col0, v_col0 = 0, HG, 2 * HG
    else:
        _, M, Cc = context.shape
        q2d = pallas_matmul(x.reshape(B * N, Cq), prepared["wq"],
                            out_dtype=jnp.bfloat16)
        kv2d = pallas_matmul(context.reshape(B * M, Cc), prepared["w_kv"],
                             out_dtype=jnp.bfloat16)
        q_src = q2d.reshape(B, N, inner)
        kv_src = kv2d.reshape(B, M, 2 * inner)
        q_col0, k_col0, v_col0 = 0, 0, HG

    # 'b n (h d) <-> (b h) n d' is done purely with BlockSpec column addressing.
    out = pallas_flash_attention(
        q_src, kv_src, heads=heads, dim_head=dim_head, heads_per_step=G,
        q_col0=q_col0, k_col0=k_col0, v_col0=v_col0, seq_q=N, seq_kv=M)

    # to_out: Linear(inner, query_dim) with fused bias; Dropout(0.0) == identity.
    y = pallas_matmul(out.reshape(B * N, inner), prepared["wo"],
                      bias=prepared["bo"], out_dtype=jnp.float32)
    return y.reshape(B, N, Cq)


# ---------------------------------------------------------------------------
# Pure-JAX reference (fp32) for a loose parity check
# ---------------------------------------------------------------------------
def _reference_forward(params, x, context=None, *, heads, dim_head):
    scale = dim_head ** (-0.5)
    ctx = x if context is None else context
    B, N, _ = x.shape
    M = ctx.shape[1]
    q = x @ params["wq"]
    k = ctx @ params["wk"]
    v = ctx @ params["wv"]

    def split(t, S):
        return t.reshape(B, S, heads, dim_head).transpose(0, 2, 1, 3)

    q, k, v = split(q, N), split(k, M), split(v, M)
    sim = jnp.einsum("bhid,bhjd->bhij", q, k) * scale
    attn = jax.nn.softmax(sim, axis=-1)
    out = jnp.einsum("bhij,bhjd->bhid", attn, v)
    out = out.transpose(0, 2, 1, 3).reshape(B, N, heads * dim_head)
    return out @ params["wo"] + params["bo"]


# ---------------------------------------------------------------------------
# Demo
# ---------------------------------------------------------------------------
if __name__ == "__main__":
    B, N, query_dim = 2, 16, 32
    heads, dim_head = 2, 64            # inner=128 -> lane-dense head packing (G=2)
    M_ctx = 8

    key = jax.random.PRNGKey(0)
    kx, kc, kp = jax.random.split(key, 3)
    x = jax.random.normal(kx, (B, N, query_dim), jnp.float32)
    context = jax.random.normal(kc, (B, M_ctx, query_dim), jnp.float32)

    params = init_cross_attention3_params(
        kp, query_dim=query_dim, context_dim=None, heads=heads, dim_head=dim_head)
    prepared = prepare_cross_attention3_params(params, heads=heads, dim_head=dim_head)

    fwd = functools.partial(cross_attention3_forward, heads=heads, dim_head=dim_head)

    out_self = jax.block_until_ready(fwd(prepared, x))                 # self-attn
    out_cross = jax.block_until_ready(fwd(prepared, x, context))       # cross-attn

    assert out_self.shape == (B, N, query_dim) and out_self.dtype == jnp.float32
    assert out_cross.shape == (B, N, query_dim) and out_cross.dtype == jnp.float32
    assert bool(jnp.all(jnp.isfinite(out_self)))
    assert bool(jnp.all(jnp.isfinite(out_cross)))

    # Loose parity vs fp32 reference (bf16 MXU inputs + approx reciprocal).
    ref_self = _reference_forward(params, x, heads=heads, dim_head=dim_head)
    ref_cross = _reference_forward(params, x, context, heads=heads, dim_head=dim_head)
    assert bool(jnp.allclose(out_self, ref_self, atol=3e-2, rtol=3e-2)), \
        float(jnp.max(jnp.abs(out_self - ref_self)))
    assert bool(jnp.allclose(out_cross, ref_cross, atol=3e-2, rtol=3e-2)), \
        float(jnp.max(jnp.abs(out_cross - ref_cross)))

    print("KERNEL_OK")
</pallas_src>

<mosaic_0001>
module attributes {stable_mosaic.version = 11 : i64} {
  func.func @_matmul_kernel(%arg0: i32, %arg1: i32, %arg2: i32, %arg3: memref<32x32xf32, #tpu.memory_space<vmem>>, %arg4: memref<32x384xbf16, #tpu.memory_space<vmem>>, %arg5: memref<32x384xbf16, #tpu.memory_space<vmem>>, %arg6: memref<32x384xf32, #tpu.memory_space<vmem>>) attributes {dimension_semantics = [#tpu.dimension_semantics<parallel>, #tpu.dimension_semantics<parallel>, #tpu.dimension_semantics<arbitrary>], iteration_bounds = array<i64: 1, 1, 1>, scalar_prefetch = 0 : i64, scratch_operands = 1 : i64, tpu.core_type = #tpu.core_type<tc>, window_params = [{transform_indices = @transform_0, window_bounds = array<i64: 32, 32>}, {transform_indices = @transform_1, window_bounds = array<i64: 32, 384>}, {transform_indices = @transform_2, window_bounds = array<i64: 32, 384>}]} {
    %c0_i32 = arith.constant 0 : i32
    %0 = arith.cmpi eq, %arg2, %c0_i32 : i32
    %1 = arith.extui %0 : i1 to i32
    %c0_i32_0 = arith.constant 0 : i32
    %2 = arith.cmpi ne, %1, %c0_i32_0 : i32
    scf.if %2 {
      %cst_10 = arith.constant 0.000000e+00 : f32
      %13 = vector.broadcast %cst_10 : f32 to vector<32x384xf32>
      %c0_11 = arith.constant 0 : index
      %c0_12 = arith.constant 0 : index
      %14 = vector.load %arg6[%c0_11, %c0_12] : memref<32x384xf32, #tpu.memory_space<vmem>>, vector<32x384xf32>
      tpu.vector_store %arg6[%c0_11, %c0_12], %13 {strides = array<i32>} : memref<32x384xf32, #tpu.memory_space<vmem>>, vector<32x384xf32>,
    } else {
    }
    %c0 = arith.constant 0 : index
    %c0_1 = arith.constant 0 : index
    %3 = vector.load %arg6[%c0, %c0_1] : memref<32x384xf32, #tpu.memory_space<vmem>>, vector<32x384xf32>
    %c0_2 = arith.constant 0 : index
    %c0_3 = arith.constant 0 : index
    %4 = vector.load %arg3[%c0_2, %c0_3] : memref<32x32xf32, #tpu.memory_space<vmem>>, vector<32x32xf32>
    %5 = arith.truncf %4 : vector<32x32xf32> to vector<32x32xbf16>
    %c0_4 = arith.constant 0 : index
    %c0_5 = arith.constant 0 : index
    %6 = vector.load %arg4[%c0_4, %c0_5] : memref<32x384xbf16, #tpu.memory_space<vmem>>, vector<32x384xbf16>
    %cst = arith.constant dense<0.000000e+00> : vector<32x384xf32>
    %7 = tpu.matmul %5, %6, %cst {dimension_numbers = #tpu.dot_dimension_numbers<[1], [0], [0], [1], [0, 0, 1, 1], [], []>} : vector<32x32xbf16>, vector<32x384xbf16>, vector<32x384xf32> -> vector<32x384xf32>
    %8 = arith.addf %3, %7 : vector<32x384xf32>
    %c0_6 = arith.constant 0 : index
    %c0_7 = arith.constant 0 : index
    %9 = vector.load %arg6[%c0_6, %c0_7] : memref<32x384xf32, #tpu.memory_space<vmem>>, vector<32x384xf32>
    tpu.vector_store %arg6[%c0_6, %c0_7], %8 {strides = array<i32>} : memref<32x384xf32, #tpu.memory_space<vmem>>, vector<32x384xf32>,
    %c0_i32_8 = arith.constant 0 : i32
    %10 = arith.cmpi eq, %arg2, %c0_i32_8 : i32
    %11 = arith.extui %10 : i1 to i32
    %c0_i32_9 = arith.constant 0 : i32
    %12 = arith.cmpi ne, %11, %c0_i32_9 : i32
    scf.if %12 {
      %c0_10 = arith.constant 0 : index
      %c0_11 = arith.constant 0 : index
      %13 = vector.load %arg6[%c0_10, %c0_11] : memref<32x384xf32, #tpu.memory_space<vmem>>, vector<32x384xf32>
      %14 = arith.truncf %13 : vector<32x384xf32> to vector<32x384xbf16>
      %c0_12 = arith.constant 0 : index
      %c0_13 = arith.constant 0 : index
      %15 = vector.load %arg5[%c0_12, %c0_13] : memref<32x384xbf16, #tpu.memory_space<vmem>>, vector<32x384xbf16>
      tpu.vector_store %arg5[%c0_12, %c0_13], %14 {strides = array<i32>} : memref<32x384xbf16, #tpu.memory_space<vmem>>, vector<32x384xbf16>,
    } else {
    }
    return
  }
  func.func @transform_0(%arg0: i32, %arg1: i32, %arg2: i32) -> (i32, i32) {
    %c0_i32 = arith.constant 0 : i32
    return %arg0, %arg2 : i32, i32
  }
  func.func @transform_1(%arg0: i32, %arg1: i32, %arg2: i32) -> (i32, i32) {
    %c0_i32 = arith.constant 0 : i32
    return %arg2, %arg1 : i32, i32
  }
  func.func @transform_2(%arg0: i32, %arg1: i32, %arg2: i32) -> (i32, i32) {
    %c0_i32 = arith.constant 0 : i32
    return %arg0, %arg1 : i32, i32
  }
}

</mosaic_0001>

<llo_original>
// kernel: tpu_custom_call.1
$region0: #{tpu_custom_call.1}
  #allocation0 [shape = 'u32[]', space=smem, size = 0x4, offset = 0x4, fixed_abs, tag = 'smem constant byte address 0x4 - core index']
  #allocation1 [shape = 'u32[72,128]{1,0:T(1,128)}', space=vmem, size = 0x9000, scoped, tag = 'internal scratch']
  #allocation2 [shape = 'f32[32,384]{1,0:T(8,128)}', space=vmem, size = 0xc000, scoped, tag = 'scratch operand']
  %s0 = inlined_call_operand.hbm [shape: f32[32,32], index: 0, kind: input, shape index: {}]
  %s1 = inlined_call_operand.hbm [shape: bf16[32,384], index: 1, kind: input, shape index: {}]
  %s2 = inlined_call_operand.hbm [shape: bf16[32,384], index: 2, kind: output, shape index: {}]
  %s3 = sld [smem:[#allocation0]]
  $region34: #{tpu_custom_call.1} parent=0
    _
  %s5 = ssub.s32 1, %s3
  %s6 = scalar_select 0, %s5, %s3
  $region1: #{tpu_custom_call.1} parent=0
    #allocation3 [shape = 'u8[16384]{0}', space=vmem, size = 0x4000, scoped, tag = 'input window, operand 0, single buffered']
    #allocation4 [shape = 's32[1]{0}', space=sflag, size = 0x4, scoped, tag = 'scoped memory for tpu_custom_call.1']
    #allocation5 [shape = 's32[1]{0}', space=sflag, size = 0x4, scoped, tag = 'scoped memory for tpu_custom_call.1']
    #allocation6 [shape = 'u8[24576]{0}', space=vmem, size = 0x6000, scoped, tag = 'input window, operand 1, single buffered']
    #allocation7 [shape = 's32[1]{0}', space=sflag, size = 0x4, scoped, tag = 'scoped memory for tpu_custom_call.1']
    #allocation8 [shape = 'u8[24576]{0}', space=vmem, size = 0x6000, scoped, tag = 'output window, operand 0, single buffered']
    %7 = vsyncpa [#allocation4], 0
    %8 = vsyncpa [#allocation7], 0
    %9 = vsyncpa [#allocation5], 0
    // Predicated region
    $region2: #{tpu_custom_call.1} parent=1 // pred_check
      _
    $region3: #{tpu_custom_call.1} parent=1 // pred_check_branch
      %11 = sbr.rel (0) target = $region5
    $region4: #{tpu_custom_call.1} parent=1 // pred_region
      %13 = vsyncadd [#allocation4], 0
      %s14 = sshll.u32 %s0, 4
      %s15 = int_to_ptr.hbm [resolvable:$true] %s14
      %s16 = sshll.u32 [#allocation3], 4
      %s17 = int_to_ptr.vmem [resolvable:$true] %s16
      %22 = dma.hbm_to_vmem [thread:$0]  %s15, 512, %s17, [#allocation4], 128, 128, 8
    $region5: #{tpu_custom_call.1} parent=1 // pred_fallthru
      _
    // Predicated region
    $region6: #{tpu_custom_call.1} parent=1 // pred_check
      _
    $region7: #{tpu_custom_call.1} parent=1 // pred_check_branch
      %24 = sbr.rel (0) target = $region9
    $region8: #{tpu_custom_call.1} parent=1 // pred_region
      %26 = vsyncadd [#allocation7], 0
      %s27 = sshll.u32 %s1, 4
      %s28 = int_to_ptr.hbm [resolvable:$true] %s27
      %s29 = sshll.u32 [#allocation6], 4
      %s30 = int_to_ptr.vmem [resolvable:$true] %s29
      %35 = dma.hbm_to_vmem [thread:$0]  %s28, 768, %s30, [#allocation7], 192, 192, 12
    $region9: #{tpu_custom_call.1} parent=1 // pred_fallthru
      _
    // Predicated region
    $region10: #{tpu_custom_call.1} parent=1 // pred_check
      _
    $region11: #{tpu_custom_call.1} parent=1 // pred_check_branch
      %37 = sbr.rel (0) target = $region13
    $region12: #{tpu_custom_call.1} parent=1 // pred_region
      %39 = dma.done [#allocation4], 512
    $region13: #{tpu_custom_call.1} parent=1 // pred_fallthru
      _
    // Predicated region
    $region14: #{tpu_custom_call.1} parent=1 // pred_check
      _
    $region15: #{tpu_custom_call.1} parent=1 // pred_check_branch
      %41 = sbr.rel (0) target = $region17
    $region16: #{tpu_custom_call.1} parent=1 // pred_region
      %43 = dma.done [#allocation7], 768
    $region17: #{tpu_custom_call.1} parent=1 // pred_fallthru
      _
    %p45 = scmp.eq.s32.totalorder 0, 0
    // Predicated region
    $region18: #{tpu_custom_call.1} parent=1 // pred_check
      %p46 = pneg %p45
    $region19: #{tpu_custom_call.1} parent=1 // pred_check_branch
      %48 = sbr.rel (%p46) target = $region21
    $region20: #{tpu_custom_call.1} parent=1 // pred_region
      %49 = vst [vmem:[#allocation2] sm:$0xff] 0.0
      %50 = vst [vmem:[#allocation2 + $0x8] sm:$0xff] 0.0
      %51 = vst [vmem:[#allocation2 + $0x10] sm:$0xff] 0.0
      %52 = vst [vmem:[#allocation2 + $0x18] sm:$0xff] 0.0
      %53 = vst [vmem:[#allocation2 + $0x20] sm:$0xff] 0.0
      %54 = vst [vmem:[#allocation2 + $0x28] sm:$0xff] 0.0
      %55 = vst [vmem:[#allocation2 + $0x30] sm:$0xff] 0.0
      %56 = vst [vmem:[#allocation2 + $0x38] sm:$0xff] 0.0
      %57 = vst [vmem:[#allocation2 + $0x40] sm:$0xff] 0.0
      %58 = vst [vmem:[#allocation2 + $0x48] sm:$0xff] 0.0
      %59 = vst [vmem:[#allocation2 + $0x50] sm:$0xff] 0.0
      %60 = vst [vmem:[#allocation2 + $0x58] sm:$0xff] 0.0
    $region21: #{tpu_custom_call.1} parent=1 // pred_fallthru
      _
    %v61 = vld [vmem:[#allocation2] sm:$0xff]
    %v62 = vld [vmem:[#allocation2 + $0x8] sm:$0xff]
    %v63 = vld [vmem:[#allocation2 + $0x10] sm:$0xff]
    %v64 = vld [vmem:[#allocation2 + $0x18] sm:$0xff]
    %v65 = vld [vmem:[#allocation2 + $0x20] sm:$0xff]
    %v66 = vld [vmem:[#allocation2 + $0x28] sm:$0xff]
    %v67 = vld [vmem:[#allocation2 + $0x30] sm:$0xff]
    %v68 = vld [vmem:[#allocation2 + $0x38] sm:$0xff]
    %v69 = vld [vmem:[#allocation2 + $0x40] sm:$0xff]
    %v70 = vld [vmem:[#allocation2 + $0x48] sm:$0xff]
    %v71 = vld [vmem:[#allocation2 + $0x50] sm:$0xff]
    %v72 = vld [vmem:[#allocation2 + $0x58] sm:$0xff]
    %v73 = vld [vmem:[#allocation3] sm:$0xff]
    %v74 = vld [vmem:[#allocation3 + $0x8] sm:$0xff]
    %v75 = vld [vmem:[#allocation3 + $0x10] sm:$0xff]
    %v76 = vld [vmem:[#allocation3 + $0x18] sm:$0xff]
    %v77 = vpack.c.bf16 %v74, %v73
    %v78 = vpack.c.bf16 %v76, %v75
    %v79 = vld [vmem:[#allocation6] sm:$0xff]
    %v80 = vld [vmem:[#allocation6 + $0x8] sm:$0xf]
    %v81 = vld [vmem:[#allocation6 + $0xc] sm:$0xff]
    %v82 = vld [vmem:[#allocation6 + $0x14] sm:$0xf]
    %v83 = vld [vmem:[#allocation6 + $0x18] sm:$0xff]
    %v84 = vld [vmem:[#allocation6 + $0x20] sm:$0xf]
    %v85 = vld [vmem:[#allocation6 + $0x24] sm:$0xff]
    %v86 = vld [vmem:[#allocation6 + $0x2c] sm:$0xf]
    %v95 = vunpack.c.l.b16 %v79
    %v96 = vunpack.c.h.b16 %v79
    %v97 = vunpack.c.l.b16 %v80
    %v98 = vunpack.c.l.b16 %v81
    %v99 = vunpack.c.h.b16 %v81
    %v100 = vunpack.c.l.b16 %v82
    %v101 = vunpack.c.l.b16 %v83
    %v102 = vunpack.c.h.b16 %v83
    %v103 = vunpack.c.l.b16 %v84
    %v104 = vunpack.c.l.b16 %v85
    %v105 = vunpack.c.h.b16 %v85
    %v106 = vunpack.c.l.b16 %v86
    %v107 = vpack.c.b16 %v98, %v95
    %v108 = vpack.c.b16 %v99, %v96
    %v109 = vpack.c.b16 %v100, %v97
    %v110 = vpack.c.b16 %v104, %v101
    %v111 = vpack.c.b16 %v105, %v102
    %v112 = vpack.c.b16 %v106, %v103
    %vm119 = vcmask 261120
    %v121 = vsel %vm119, %v77, 0
    %v124 = vsel %vm119, %v78, 0
    %126 = vmatpush.bf16.msra.mxu0 0
    %127 = vmatpush.bf16.msra.mxu0 0
    %128 = vmatpush.bf16.msra.mxu0 0
    %129 = vmatpush.bf16.msra.mxu0 0
    %130 = vmatpush.bf16.msra.mxu0 0
    %131 = vmatpush.bf16.msra.mxu0 0
    %132 = vmatpush.bf16.msra.mxu0 %v110
    %133 = vmatpush.bf16.msra.mxu0 %v107
    %134 = vmatmul.bf16.gmra.mxu0 %v121
    %v135 = vpop.f32.mrf.mxu0
    %v136 = vadd.f32 0.0, %v135
    %v137 = vpop.f32.mrf.mxu0
    %v138 = vadd.f32 0.0, %v137
    %139 = vmatmul.bf16.gmra.mxu0 %v124
    %v140 = vpop.f32.mrf.mxu0
    %v141 = vadd.f32 0.0, %v140
    %v142 = vpop.f32.mrf.mxu0
    %v143 = vadd.f32 0.0, %v142
    %144 = vdwg.mxu0
    %145 = vmatpush.bf16.msra.mxu0 0
    %146 = vmatpush.bf16.msra.mxu0 0
    %147 = vmatpush.bf16.msra.mxu0 0
    %148 = vmatpush.bf16.msra.mxu0 0
    %149 = vmatpush.bf16.msra.mxu0 0
    %150 = vmatpush.bf16.msra.mxu0 0
    %151 = vmatpush.bf16.msra.mxu0 %v111
    %152 = vmatpush.bf16.msra.mxu0 %v108
    %153 = vmatmul.bf16.gmra.mxu0 %v121
    %v154 = vpop.f32.mrf.mxu0
    %v155 = vadd.f32 0.0, %v154
    %v156 = vpop.f32.mrf.mxu0
    %v157 = vadd.f32 0.0, %v156
    %158 = vmatmul.bf16.gmra.mxu0 %v124
    %v159 = vpop.f32.mrf.mxu0
    %v160 = vadd.f32 0.0, %v159
    %v161 = vpop.f32.mrf.mxu0
    %v162 = vadd.f32 0.0, %v161
    %163 = vdwg.mxu0
    %164 = vmatpush.bf16.msra.mxu0 0
    %165 = vmatpush.bf16.msra.mxu0 0
    %166 = vmatpush.bf16.msra.mxu0 0
    %167 = vmatpush.bf16.msra.mxu0 0
    %168 = vmatpush.bf16.msra.mxu0 0
    %169 = vmatpush.bf16.msra.mxu0 0
    %170 = vmatpush.bf16.msra.mxu0 %v112
    %171 = vmatpush.bf16.msra.mxu0 %v109
    %172 = vmatmul.bf16.gmra.mxu0 %v121
    %v173 = vpop.f32.mrf.mxu0
    %v174 = vadd.f32 0.0, %v173
    %v175 = vpop.f32.mrf.mxu0
    %v176 = vadd.f32 0.0, %v175
    %177 = vmatmul.bf16.gmra.mxu0 %v124
    %v178 = vpop.f32.mrf.mxu0
    %v179 = vadd.f32 0.0, %v178
    %v180 = vpop.f32.mrf.mxu0
    %v181 = vadd.f32 0.0, %v180
    %182 = vdwg.mxu0
    %v183 = vadd.f32 %v61, %v136
    %v184 = vadd.f32 %v62, %v155
    %v185 = vadd.f32 %v63, %v174
    %v186 = vadd.f32 %v64, %v138
    %v187 = vadd.f32 %v65, %v157
    %v188 = vadd.f32 %v66, %v176
    %v189 = vadd.f32 %v67, %v141
    %v190 = vadd.f32 %v68, %v160
    %v191 = vadd.f32 %v69, %v179
    %v192 = vadd.f32 %v70, %v143
    %v193 = vadd.f32 %v71, %v162
    %v194 = vadd.f32 %v72, %v181
    %195 = vst [vmem:[#allocation2] sm:$0xff] %v183
    %196 = vst [vmem:[#allocation2 + $0x8] sm:$0xff] %v184
    %197 = vst [vmem:[#allocation2 + $0x10] sm:$0xff] %v185
    %198 = vst [vmem:[#allocation2 + $0x18] sm:$0xff] %v186
    %199 = vst [vmem:[#allocation2 + $0x20] sm:$0xff] %v187
    %200 = vst [vmem:[#allocation2 + $0x28] sm:$0xff] %v188
    %201 = vst [vmem:[#allocation2 + $0x30] sm:$0xff] %v189
    %202 = vst [vmem:[#allocation2 + $0x38] sm:$0xff] %v190
    %203 = vst [vmem:[#allocation2 + $0x40] sm:$0xff] %v191
    %204 = vst [vmem:[#allocation2 + $0x48] sm:$0xff] %v192
    %205 = vst [vmem:[#allocation2 + $0x50] sm:$0xff] %v193
    %206 = vst [vmem:[#allocation2 + $0x58] sm:$0xff] %v194
    // Predicated region
    $region22: #{tpu_custom_call.1} parent=1 // pred_check
      %p207 = pneg %p45
    $region23: #{tpu_custom_call.1} parent=1 // pred_check_branch
      %209 = sbr.rel (%p207) target = $region25
    $region24: #{tpu_custom_call.1} parent=1 // pred_region
      %v210 = vld [vmem:[#allocation2] sm:$0xff]
      %v211 = vld [vmem:[#allocation2 + $0x8] sm:$0xff]
      %v212 = vld [vmem:[#allocation2 + $0x10] sm:$0xff]
      %v213 = vld [vmem:[#allocation2 + $0x18] sm:$0xff]
      %v214 = vld [vmem:[#allocation2 + $0x20] sm:$0xff]
      %v215 = vld [vmem:[#allocation2 + $0x28] sm:$0xff]
      %v216 = vld [vmem:[#allocation2 + $0x30] sm:$0xff]
      %v217 = vld [vmem:[#allocation2 + $0x38] sm:$0xff]
      %v218 = vld [vmem:[#allocation2 + $0x40] sm:$0xff]
      %v219 = vld [vmem:[#allocation2 + $0x48] sm:$0xff]
      %v220 = vld [vmem:[#allocation2 + $0x50] sm:$0xff]
      %v221 = vld [vmem:[#allocation2 + $0x58] sm:$0xff]
      %v222 = vpack.c.bf16 %v211, %v210
      %v223 = vpack.c.bf16 %v212, %v212
      %v224 = vpack.c.bf16 %v214, %v213
      %v225 = vpack.c.bf16 %v215, %v215
      %v226 = vpack.c.bf16 %v217, %v216
      %v227 = vpack.c.bf16 %v218, %v218
      %v228 = vpack.c.bf16 %v220, %v219
      %v229 = vpack.c.bf16 %v221, %v221
      %230 = vst [vmem:[#allocation8] sm:$0xff] %v222
      %231 = vst [vmem:[#allocation8 + $0x8] sm:$0xf] %v223
      %232 = vst [vmem:[#allocation8 + $0xc] sm:$0xff] %v224
      %233 = vst [vmem:[#allocation8 + $0x14] sm:$0xf] %v225
      %234 = vst [vmem:[#allocation8 + $0x18] sm:$0xff] %v226
      %235 = vst [vmem:[#allocation8 + $0x20] sm:$0xf] %v227
      %236 = vst [vmem:[#allocation8 + $0x24] sm:$0xff] %v228
      %237 = vst [vmem:[#allocation8 + $0x2c] sm:$0xf] %v229
    $region25: #{tpu_custom_call.1} parent=1 // pred_fallthru
      _
    // Predicated region
    $region26: #{tpu_custom_call.1} parent=1 // pred_check
      _
    $region27: #{tpu_custom_call.1} parent=1 // pred_check_branch
      %239 = sbr.rel (0) target = $region29
    $region28: #{tpu_custom_call.1} parent=1 // pred_region
      %241 = vsyncadd [#allocation5], 0
      %s242 = sshll.u32 [#allocation8], 4
      %s243 = int_to_ptr.vmem [resolvable:$true] %s242
      %s244 = sshll.u32 %s2, 4
      %s245 = int_to_ptr.hbm [resolvable:$true] %s244
      %250 = dma.vmem_to_hbm [thread:$0]  %s243, 768, %s245, [#allocation5], 192, 192, 12
    $region29: #{tpu_custom_call.1} parent=1 // pred_fallthru
      _
    // Predicated region
    $region30: #{tpu_custom_call.1} parent=1 // pred_check
      _
    $region31: #{tpu_custom_call.1} parent=1 // pred_check_branch
      %252 = sbr.rel (0) target = $region33
    $region32: #{tpu_custom_call.1} parent=1 // pred_region
      %254 = dma.done [#allocation5], 768
    $region33: #{tpu_custom_call.1} parent=1 // pred_fallthru
      _
    %255 = vsyncpa [#allocation4], 1
    %256 = vsyncpa [#allocation7], 1
    %257 = vsyncpa [#allocation5], 1

</llo_original>
